<compile_context>
chip_gen: v5e
topology: v5e:2x2
jax: 0.10.0
libtpu: 0.0.40
codegen_flags: <defaults>
</compile_context>

<pallas_src>
import jax
import jax.numpy as jnp
from jax.experimental import pallas as pl
from jax.experimental.pallas import tpu as pltpu

H = 32            # hidden_size
V = 64            # output_size (vocab)
T_STEPS = 8       # decode steps fused into ONE grid iteration (== sublane count)


def _round_up(x, m):
    return (x + m - 1) // m * m


GP = _round_up(4 * H, 128)   # padded gate lanes (4H == 128 for H=32)
VP = _round_up(V, 128)       # padded vocab lanes (64 -> 128)


def decoder_rnn_kernel(tok_ref, h_ref, emb_ref, wih_ref, whh_ref, bbig_ref,
                       wout_ref, bout_ref, logits_ref, x_scratch):
    # --- 1) Hidden-side gate contribution, computed ONCE -----------------------
    # The reference forward never advances `hidden`, so h is constant across all
    # decode steps; fold h @ W_hh-blocks together with the biases.
    h = h_ref[...]                                                       # (1, H)
    hgates = jnp.dot(h, whh_ref[...],
                     preferred_element_type=jnp.float32) + bbig_ref[...]  # (1, GP)

    # --- 2) Embedding gather for all T tokens into one (T, H) block ------------
    # Table already has F.relu pre-applied at pack time (token-only op).
    for t in range(T_STEPS):                           # unrolled, T static rows
        tok = tok_ref[t]                               # token id from SMEM
        x_scratch[pl.ds(t, 1), :] = emb_ref[pl.ds(tok, 1), :]
    x = x_scratch[...]                                                   # (T, H)

    # --- 3) One fused (T,H)x(H,GP) gate matmul (input-side contribution) -------
    # Column blocks (each H lanes wide):
    #   [0:H]   r:  i_r + h_r + (b_ih_r + b_hh_r)
    #   [H:2H]  z:  i_z + h_z + (b_ih_z + b_hh_z)
    #   [2H:3H] n:  i_n + b_ih_n
    #   [3H:4H] n:  h_n + b_hh_n   (kept separate: it gets scaled by r)
    gates = jnp.dot(x, wih_ref[...],
                    preferred_element_type=jnp.float32) + hgates         # (T, GP)

    r = jax.nn.sigmoid(gates[:, 0:H])
    z = jax.nn.sigmoid(gates[:, H:2 * H])
    n = jnp.tanh(gates[:, 2 * H:3 * H] + r * gates[:, 3 * H:4 * H])
    h_new = (1.0 - z) * n + z * h                      # (T, H), h broadcast over rows

    # --- 4) Output projection Linear(H -> V), vocab lanes zero-padded to VP ----
    # Single dense (T, VP) = (8, 128) tile -> one unmasked full-vreg store.
    logits_ref[...] = (jnp.dot(h_new, wout_ref[...],
                               preferred_element_type=jnp.float32) + bout_ref[...])


def _decoder_call(tokens, h2d, kp):
    """All T_STEPS decode steps in ONE grid iteration of one pallas_call.

    tokens: (T_STEPS,) int32, h2d: (1, H) f32.  Returns padded logits (T_STEPS, VP).
    """
    const = lambda i, tok_ref: (0, 0)   # every operand: same block every iteration

    grid_spec = pltpu.PrefetchScalarGridSpec(
        num_scalar_prefetch=1,          # tokens -> SMEM, visible to kernel & index_maps
        grid=(1,),
        in_specs=[
            pl.BlockSpec((1, H), const),                 # hidden (constant)
            pl.BlockSpec(kp["emb_relu"].shape, const),   # (V, H)  relu(embedding)
            pl.BlockSpec(kp["w_ih_p"].shape, const),     # (H, GP) fused input gate weights
            pl.BlockSpec(kp["w_hh_p"].shape, const),     # (H, GP) fused hidden gate weights
            pl.BlockSpec(kp["b_big"].shape, const),      # (1, GP) fused gate biases
            pl.BlockSpec(kp["w_out_p"].shape, const),    # (H, VP) output Linear (transposed)
            pl.BlockSpec(kp["b_out_p"].shape, const),    # (1, VP)
        ],
        out_specs=pl.BlockSpec((T_STEPS, VP), const),    # one dense (8,128) tile
        scratch_shapes=[pltpu.VMEM((T_STEPS, H), jnp.float32)],
    )

    logits_pad = pl.pallas_call(
        decoder_rnn_kernel,
        grid_spec=grid_spec,
        out_shape=jax.ShapeDtypeStruct((T_STEPS, VP), jnp.float32),
        compiler_params=pltpu.CompilerParams(
            dimension_semantics=("arbitrary",)),   # nothing worth megacore-sharding
    )(tokens, h2d, kp["emb_relu"], kp["w_ih_p"], kp["w_hh_p"], kp["b_big"],
      kp["w_out_p"], kp["b_out_p"])
    return logits_pad


@jax.jit
def decoder_rnn_decode(tokens, hidden, kp):
    """Fused T-step decode (one kernel launch). Returns (log_probs (T,V), logits (T,V))."""
    h2d = hidden.reshape(1, H).astype(jnp.float32)
    logits_pad = _decoder_call(tokens.astype(jnp.int32), h2d, kp)
    logits = logits_pad[:, :V]
    # nn.LogSoftmax(dim=1) on each step's (1, 1, V) linear output reduces over a
    # singleton (batch) axis -> identically zero; applied here (trivially) instead
    # of wasting a second kernel output + writeback.
    log_probs = jax.nn.log_softmax(logits.reshape(T_STEPS, 1, V), axis=1)
    return log_probs.reshape(T_STEPS, V), logits


@jax.jit
def decoder_rnn_forward(token, hidden, kp):
    """Single step, module-matching interface: (input, hidden) -> (output, hidden)."""
    # Reuse the fused multi-token kernel (token broadcast to T rows) rather than
    # compiling a dedicated, purely launch/prologue-bound T=1 pallas_call.
    tok = jnp.asarray(token, jnp.int32).reshape(())
    tokens = jnp.full((T_STEPS,), tok, jnp.int32)
    h2d = hidden.reshape(1, H).astype(jnp.float32)
    logits_pad = _decoder_call(tokens, h2d, kp)
    logits0 = logits_pad[0:1, :V].reshape(1, 1, V)
    output = jax.nn.log_softmax(logits0, axis=1)       # dim=1 singleton -> zeros (faithful)
    return output, hidden                              # reference returns ORIGINAL hidden


def init_raw_params(key):
    """PyTorch-layout parameters: nn.Embedding(V,H), nn.GRU(H,H), nn.Linear(H,V)."""
    ks = jax.random.split(key, 7)
    s = 0.1
    return {
        "embedding": s * jax.random.normal(ks[0], (V, H), jnp.float32),
        "w_ih": s * jax.random.normal(ks[1], (3 * H, H), jnp.float32),   # gate order [r|z|n]
        "w_hh": s * jax.random.normal(ks[2], (3 * H, H), jnp.float32),
        "b_ih": s * jax.random.normal(ks[3], (3 * H,), jnp.float32),
        "b_hh": s * jax.random.normal(ks[4], (3 * H,), jnp.float32),
        "w_out": s * jax.random.normal(ks[5], (V, H), jnp.float32),
        "b_out": s * jax.random.normal(ks[6], (V,), jnp.float32),
    }


def pack_params(raw):
    """Pack PyTorch-layout params into the lane-dense fused kernel layout."""
    wih_t = raw["w_ih"].T            # (H, 3H), columns [r|z|n]
    whh_t = raw["w_hh"].T            # (H, 3H)

    # Input-side fused gate weights: columns [ r | z | n_input | 0 ]
    w_ih_p = jnp.zeros((H, GP), jnp.float32)
    w_ih_p = w_ih_p.at[:, 0:3 * H].set(wih_t)

    # Hidden-side fused gate weights: columns [ r | z | 0 | n_hidden ]
    w_hh_p = jnp.zeros((H, GP), jnp.float32)
    w_hh_p = w_hh_p.at[:, 0:2 * H].set(whh_t[:, 0:2 * H])
    w_hh_p = w_hh_p.at[:, 3 * H:4 * H].set(whh_t[:, 2 * H:3 * H])

    # Fused biases: [ b_ih_r+b_hh_r | b_ih_z+b_hh_z | b_ih_n | b_hh_n ]
    b_big = jnp.zeros((1, GP), jnp.float32)
    b_big = b_big.at[0, 0:2 * H].set(raw["b_ih"][0:2 * H] + raw["b_hh"][0:2 * H])
    b_big = b_big.at[0, 2 * H:3 * H].set(raw["b_ih"][2 * H:3 * H])
    b_big = b_big.at[0, 3 * H:4 * H].set(raw["b_hh"][2 * H:3 * H])

    w_out_p = jnp.zeros((H, VP), jnp.float32).at[:, :V].set(raw["w_out"].T)
    b_out_p = jnp.zeros((1, VP), jnp.float32).at[0, :V].set(raw["b_out"])

    # F.relu pre-applied to the embedding table (token-only op, values unchanged).
    emb_relu = jnp.maximum(raw["embedding"].astype(jnp.float32), 0.0)

    return {"emb_relu": emb_relu,
            "w_ih_p": w_ih_p, "w_hh_p": w_hh_p, "b_big": b_big,
            "w_out_p": w_out_p, "b_out_p": b_out_p}


def _reference_step(token, hidden, raw):
    """Pure-JAX replica of the PyTorch forward (one step)."""
    x = jnp.maximum(raw["embedding"][token].reshape(1, H), 0.0)
    h = hidden.reshape(1, H)
    gi = x @ raw["w_ih"].T + raw["b_ih"][None, :]
    gh = h @ raw["w_hh"].T + raw["b_hh"][None, :]
    r = jax.nn.sigmoid(gi[:, :H] + gh[:, :H])
    z = jax.nn.sigmoid(gi[:, H:2 * H] + gh[:, H:2 * H])
    n = jnp.tanh(gi[:, 2 * H:] + r * gh[:, 2 * H:])
    h_new = (1.0 - z) * n + z * h
    logits = h_new @ raw["w_out"].T + raw["b_out"][None, :]          # (1, V)
    log_probs = jax.nn.log_softmax(logits.reshape(1, 1, V), axis=1)  # dim=1 -> zeros
    return log_probs, logits


if __name__ == "__main__":
    key = jax.random.PRNGKey(0)
    pkey, hkey, tkey = jax.random.split(key, 3)

    raw = init_raw_params(pkey)
    kp = pack_params(raw)

    hidden = 0.1 * jax.random.normal(hkey, (1, 1, H), jnp.float32)
    tokens = jax.random.randint(tkey, (T_STEPS,), 0, V, dtype=jnp.int32)

    # Fused multi-step decode: ONE pallas_call, ONE grid iteration, weights VMEM-resident.
    logp, logits = decoder_rnn_decode(tokens, hidden, kp)
    logp = jax.block_until_ready(logp)
    logits = jax.block_until_ready(logits)

    # Single-step, module-matching interface (reuses the fused kernel).
    out, hid = decoder_rnn_forward(tokens[0], hidden, kp)
    out = jax.block_until_ready(out)
    hid = jax.block_until_ready(hid)

    # Pure-JAX reference (PyTorch semantics).
    ref_logp, ref_logits = [], []
    for t in range(T_STEPS):
        lp, lg = _reference_step(int(tokens[t]), hidden, raw)
        ref_logp.append(lp.reshape(V))
        ref_logits.append(lg.reshape(V))
    ref_logp = jnp.stack(ref_logp)
    ref_logits = jnp.stack(ref_logits)

    assert logp.shape == (T_STEPS, V) and logits.shape == (T_STEPS, V)
    assert jnp.allclose(logits, ref_logits, atol=1e-5, rtol=1e-5), "logits mismatch vs reference"
    assert jnp.allclose(logp, ref_logp, atol=1e-6), "log-prob mismatch vs reference"
    assert out.shape == (1, 1, V)
    assert jnp.allclose(out, ref_logp[0].reshape(1, 1, V), atol=1e-6), "single-step output mismatch"
    assert hid.shape == (1, 1, H) and jnp.allclose(hid, hidden), "hidden must be returned unchanged"

    print("KERNEL_OK")
</pallas_src>

<mosaic_0001>
module attributes {stable_mosaic.version = 11 : i64} {
  func.func @decoder_rnn_kernel(%arg0: i32, %arg1: memref<8xi32, #tpu.memory_space<smem>>, %arg2: memref<1x32xf32, #tpu.memory_space<vmem>>, %arg3: memref<64x32xf32, #tpu.memory_space<vmem>>, %arg4: memref<32x128xf32, #tpu.memory_space<vmem>>, %arg5: memref<32x128xf32, #tpu.memory_space<vmem>>, %arg6: memref<1x128xf32, #tpu.memory_space<vmem>>, %arg7: memref<32x128xf32, #tpu.memory_space<vmem>>, %arg8: memref<1x128xf32, #tpu.memory_space<vmem>>, %arg9: memref<8x128xf32, #tpu.memory_space<vmem>>, %arg10: memref<8x32xf32, #tpu.memory_space<vmem>>) attributes {dimension_semantics = [#tpu.dimension_semantics<arbitrary>], iteration_bounds = array<i64: 1>, scalar_prefetch = 1 : i64, scratch_operands = 1 : i64, tpu.core_type = #tpu.core_type<tc>, window_params = [{pipeline_mode = #tpu.pipeline_mode<synchronous>, transform_indices = @transform_0, window_bounds = array<i64: 1, 32>}, {pipeline_mode = #tpu.pipeline_mode<synchronous>, transform_indices = @transform_1, window_bounds = array<i64: 64, 32>}, {pipeline_mode = #tpu.pipeline_mode<synchronous>, transform_indices = @transform_2, window_bounds = array<i64: 32, 128>}, {pipeline_mode = #tpu.pipeline_mode<synchronous>, transform_indices = @transform_3, window_bounds = array<i64: 32, 128>}, {pipeline_mode = #tpu.pipeline_mode<synchronous>, transform_indices = @transform_4, window_bounds = array<i64: 1, 128>}, {pipeline_mode = #tpu.pipeline_mode<synchronous>, transform_indices = @transform_5, window_bounds = array<i64: 32, 128>}, {pipeline_mode = #tpu.pipeline_mode<synchronous>, transform_indices = @transform_6, window_bounds = array<i64: 1, 128>}, {pipeline_mode = #tpu.pipeline_mode<synchronous>, transform_indices = @transform_7, window_bounds = array<i64: 8, 128>}]} {
    %c0 = arith.constant 0 : index
    %c0_0 = arith.constant 0 : index
    %0 = vector.load %arg2[%c0, %c0_0] : memref<1x32xf32, #tpu.memory_space<vmem>>, vector<1x32xf32>
    %c0_1 = arith.constant 0 : index
    %c0_2 = arith.constant 0 : index
    %1 = vector.load %arg5[%c0_1, %c0_2] : memref<32x128xf32, #tpu.memory_space<vmem>>, vector<32x128xf32>
    %cst = arith.constant dense<0.000000e+00> : vector<1x128xf32>
    %2 = tpu.matmul %0, %1, %cst {dimension_numbers = #tpu.dot_dimension_numbers<[1], [0], [0], [1], [0, 0, 1, 1], [], []>} : vector<1x32xf32>, vector<32x128xf32>, vector<1x128xf32> -> vector<1x128xf32>
    %c0_3 = arith.constant 0 : index
    %c0_4 = arith.constant 0 : index
    %3 = vector.load %arg6[%c0_3, %c0_4] : memref<1x128xf32, #tpu.memory_space<vmem>>, vector<1x128xf32>
    %4 = arith.addf %2, %3 : vector<1x128xf32>
    %c0_5 = arith.constant 0 : index
    %5 = memref.load %arg1[%c0_5] : memref<8xi32, #tpu.memory_space<smem>>
    %6 = arith.index_cast %5 : i32 to index
    %c0_6 = arith.constant 0 : index
    %7 = vector.load %arg3[%6, %c0_6] : memref<64x32xf32, #tpu.memory_space<vmem>>, vector<1x32xf32>
    %c0_7 = arith.constant 0 : index
    %c0_8 = arith.constant 0 : index
    %8 = vector.load %arg10[%c0_7, %c0_8] : memref<8x32xf32, #tpu.memory_space<vmem>>, vector<1x32xf32>
    tpu.vector_store %arg10[%c0_7, %c0_8], %7 {strides = array<i32>} : memref<8x32xf32, #tpu.memory_space<vmem>>, vector<1x32xf32>,
    %c1 = arith.constant 1 : index
    %9 = memref.load %arg1[%c1] : memref<8xi32, #tpu.memory_space<smem>>
    %10 = arith.index_cast %9 : i32 to index
    %c0_9 = arith.constant 0 : index
    %11 = vector.load %arg3[%10, %c0_9] : memref<64x32xf32, #tpu.memory_space<vmem>>, vector<1x32xf32>
    %c1_10 = arith.constant 1 : index
    %c0_11 = arith.constant 0 : index
    %12 = vector.load %arg10[%c1_10, %c0_11] : memref<8x32xf32, #tpu.memory_space<vmem>>, vector<1x32xf32>
    tpu.vector_store %arg10[%c1_10, %c0_11], %11 {strides = array<i32>} : memref<8x32xf32, #tpu.memory_space<vmem>>, vector<1x32xf32>,
    %c2 = arith.constant 2 : index
    %13 = memref.load %arg1[%c2] : memref<8xi32, #tpu.memory_space<smem>>
    %14 = arith.index_cast %13 : i32 to index
    %c0_12 = arith.constant 0 : index
    %15 = vector.load %arg3[%14, %c0_12] : memref<64x32xf32, #tpu.memory_space<vmem>>, vector<1x32xf32>
    %c2_13 = arith.constant 2 : index
    %c0_14 = arith.constant 0 : index
    %16 = vector.load %arg10[%c2_13, %c0_14] : memref<8x32xf32, #tpu.memory_space<vmem>>, vector<1x32xf32>
    tpu.vector_store %arg10[%c2_13, %c0_14], %15 {strides = array<i32>} : memref<8x32xf32, #tpu.memory_space<vmem>>, vector<1x32xf32>,
    %c3 = arith.constant 3 : index
    %17 = memref.load %arg1[%c3] : memref<8xi32, #tpu.memory_space<smem>>
    %18 = arith.index_cast %17 : i32 to index
    %c0_15 = arith.constant 0 : index
    %19 = vector.load %arg3[%18, %c0_15] : memref<64x32xf32, #tpu.memory_space<vmem>>, vector<1x32xf32>
    %c3_16 = arith.constant 3 : index
    %c0_17 = arith.constant 0 : index
    %20 = vector.load %arg10[%c3_16, %c0_17] : memref<8x32xf32, #tpu.memory_space<vmem>>, vector<1x32xf32>
    tpu.vector_store %arg10[%c3_16, %c0_17], %19 {strides = array<i32>} : memref<8x32xf32, #tpu.memory_space<vmem>>, vector<1x32xf32>,
    %c4 = arith.constant 4 : index
    %21 = memref.load %arg1[%c4] : memref<8xi32, #tpu.memory_space<smem>>
    %22 = arith.index_cast %21 : i32 to index
    %c0_18 = arith.constant 0 : index
    %23 = vector.load %arg3[%22, %c0_18] : memref<64x32xf32, #tpu.memory_space<vmem>>, vector<1x32xf32>
    %c4_19 = arith.constant 4 : index
    %c0_20 = arith.constant 0 : index
    %24 = vector.load %arg10[%c4_19, %c0_20] : memref<8x32xf32, #tpu.memory_space<vmem>>, vector<1x32xf32>
    tpu.vector_store %arg10[%c4_19, %c0_20], %23 {strides = array<i32>} : memref<8x32xf32, #tpu.memory_space<vmem>>, vector<1x32xf32>,
    %c5 = arith.constant 5 : index
    %25 = memref.load %arg1[%c5] : memref<8xi32, #tpu.memory_space<smem>>
    %26 = arith.index_cast %25 : i32 to index
    %c0_21 = arith.constant 0 : index
    %27 = vector.load %arg3[%26, %c0_21] : memref<64x32xf32, #tpu.memory_space<vmem>>, vector<1x32xf32>
    %c5_22 = arith.constant 5 : index
    %c0_23 = arith.constant 0 : index
    %28 = vector.load %arg10[%c5_22, %c0_23] : memref<8x32xf32, #tpu.memory_space<vmem>>, vector<1x32xf32>
    tpu.vector_store %arg10[%c5_22, %c0_23], %27 {strides = array<i32>} : memref<8x32xf32, #tpu.memory_space<vmem>>, vector<1x32xf32>,
    %c6 = arith.constant 6 : index
    %29 = memref.load %arg1[%c6] : memref<8xi32, #tpu.memory_space<smem>>
    %30 = arith.index_cast %29 : i32 to index
    %c0_24 = arith.constant 0 : index
    %31 = vector.load %arg3[%30, %c0_24] : memref<64x32xf32, #tpu.memory_space<vmem>>, vector<1x32xf32>
    %c6_25 = arith.constant 6 : index
    %c0_26 = arith.constant 0 : index
    %32 = vector.load %arg10[%c6_25, %c0_26] : memref<8x32xf32, #tpu.memory_space<vmem>>, vector<1x32xf32>
    tpu.vector_store %arg10[%c6_25, %c0_26], %31 {strides = array<i32>} : memref<8x32xf32, #tpu.memory_space<vmem>>, vector<1x32xf32>,
    %c7 = arith.constant 7 : index
    %33 = memref.load %arg1[%c7] : memref<8xi32, #tpu.memory_space<smem>>
    %34 = arith.index_cast %33 : i32 to index
    %c0_27 = arith.constant 0 : index
    %35 = vector.load %arg3[%34, %c0_27] : memref<64x32xf32, #tpu.memory_space<vmem>>, vector<1x32xf32>
    %c7_28 = arith.constant 7 : index
    %c0_29 = arith.constant 0 : index
    %36 = vector.load %arg10[%c7_28, %c0_29] : memref<8x32xf32, #tpu.memory_space<vmem>>, vector<1x32xf32>
    tpu.vector_store %arg10[%c7_28, %c0_29], %35 {strides = array<i32>} : memref<8x32xf32, #tpu.memory_space<vmem>>, vector<1x32xf32>,
    %c0_30 = arith.constant 0 : index
    %c0_31 = arith.constant 0 : index
    %37 = vector.load %arg10[%c0_30, %c0_31] : memref<8x32xf32, #tpu.memory_space<vmem>>, vector<8x32xf32>
    %c0_32 = arith.constant 0 : index
    %c0_33 = arith.constant 0 : index
    %38 = vector.load %arg4[%c0_32, %c0_33] : memref<32x128xf32, #tpu.memory_space<vmem>>, vector<32x128xf32>
    %cst_34 = arith.constant dense<0.000000e+00> : vector<8x128xf32>
    %39 = tpu.matmul %37, %38, %cst_34 {dimension_numbers = #tpu.dot_dimension_numbers<[1], [0], [0], [1], [0, 0, 1, 1], [], []>} : vector<8x32xf32>, vector<32x128xf32>, vector<8x128xf32> -> vector<8x128xf32>
    %40 = vector.broadcast %4 : vector<1x128xf32> to vector<8x128xf32>
    %41 = arith.addf %39, %40 : vector<8x128xf32>
    %42 = vector.extract_strided_slice %41 {offsets = [0, 0], sizes = [8, 32], strides = [1, 1]} : vector<8x128xf32> to vector<8x32xf32>
    %43 = arith.negf %42 : vector<8x32xf32>
    %44 = math.exp %43 : vector<8x32xf32>
    %cst_35 = arith.constant 1.000000e+00 : f32
    %45 = vector.broadcast %cst_35 : f32 to vector<8x32xf32>
    %46 = arith.addf %45, %44 : vector<8x32xf32>
    %47 = arith.divf %45, %46 : vector<8x32xf32>
    %48 = vector.extract_strided_slice %41 {offsets = [0, 32], sizes = [8, 32], strides = [1, 1]} : vector<8x128xf32> to vector<8x32xf32>
    %49 = arith.negf %48 : vector<8x32xf32>
    %50 = math.exp %49 : vector<8x32xf32>
    %cst_36 = arith.constant 1.000000e+00 : f32
    %51 = vector.broadcast %cst_36 : f32 to vector<8x32xf32>
    %52 = arith.addf %51, %50 : vector<8x32xf32>
    %53 = arith.divf %51, %52 : vector<8x32xf32>
    %54 = vector.extract_strided_slice %41 {offsets = [0, 64], sizes = [8, 32], strides = [1, 1]} : vector<8x128xf32> to vector<8x32xf32>
    %55 = vector.extract_strided_slice %41 {offsets = [0, 96], sizes = [8, 32], strides = [1, 1]} : vector<8x128xf32> to vector<8x32xf32>
    %56 = arith.mulf %47, %55 : vector<8x32xf32>
    %57 = arith.addf %54, %56 : vector<8x32xf32>
    %58 = math.tanh %57 : vector<8x32xf32>
    %cst_37 = arith.constant 1.000000e+00 : f32
    %59 = vector.broadcast %cst_37 : f32 to vector<8x32xf32>
    %60 = arith.subf %59, %53 : vector<8x32xf32>
    %61 = arith.mulf %60, %58 : vector<8x32xf32>
    %62 = vector.broadcast %0 : vector<1x32xf32> to vector<8x32xf32>
    %63 = arith.mulf %53, %62 : vector<8x32xf32>
    %64 = arith.addf %61, %63 : vector<8x32xf32>
    %c0_38 = arith.constant 0 : index
    %c0_39 = arith.constant 0 : index
    %65 = vector.load %arg7[%c0_38, %c0_39] : memref<32x128xf32, #tpu.memory_space<vmem>>, vector<32x128xf32>
    %cst_40 = arith.constant dense<0.000000e+00> : vector<8x128xf32>
    %66 = tpu.matmul %64, %65, %cst_40 {dimension_numbers = #tpu.dot_dimension_numbers<[1], [0], [0], [1], [0, 0, 1, 1], [], []>} : vector<8x32xf32>, vector<32x128xf32>, vector<8x128xf32> -> vector<8x128xf32>
    %c0_41 = arith.constant 0 : index
    %c0_42 = arith.constant 0 : index
    %67 = vector.load %arg8[%c0_41, %c0_42] : memref<1x128xf32, #tpu.memory_space<vmem>>, vector<1x128xf32>
    %68 = vector.broadcast %67 : vector<1x128xf32> to vector<8x128xf32>
    %69 = arith.addf %66, %68 : vector<8x128xf32>
    %c0_43 = arith.constant 0 : index
    %c0_44 = arith.constant 0 : index
    %70 = vector.load %arg9[%c0_43, %c0_44] : memref<8x128xf32, #tpu.memory_space<vmem>>, vector<8x128xf32>
    tpu.vector_store %arg9[%c0_43, %c0_44], %69 {strides = array<i32>} : memref<8x128xf32, #tpu.memory_space<vmem>>, vector<8x128xf32>,
    return
  }
  func.func @transform_0(%arg0: i32, %arg1: memref<8xi32, #tpu.memory_space<smem>>) -> (i32, i32) {
    %c0_i32 = arith.constant 0 : i32
    %c0_i32_0 = arith.constant 0 : i32
    %c0_i32_1 = arith.constant 0 : i32
    return %c0_i32, %c0_i32_0 : i32, i32
  }
  func.func @transform_1(%arg0: i32, %arg1: memref<8xi32, #tpu.memory_space<smem>>) -> (i32, i32) {
    %c0_i32 = arith.constant 0 : i32
    %c0_i32_0 = arith.constant 0 : i32
    %c0_i32_1 = arith.constant 0 : i32
    return %c0_i32, %c0_i32_0 : i32, i32
  }
  func.func @transform_2(%arg0: i32, %arg1: memref<8xi32, #tpu.memory_space<smem>>) -> (i32, i32) {
    %c0_i32 = arith.constant 0 : i32
    %c0_i32_0 = arith.constant 0 : i32
    %c0_i32_1 = arith.constant 0 : i32
    return %c0_i32, %c0_i32_0 : i32, i32
  }
  func.func @transform_3(%arg0: i32, %arg1: memref<8xi32, #tpu.memory_space<smem>>) -> (i32, i32) {
    %c0_i32 = arith.constant 0 : i32
    %c0_i32_0 = arith.constant 0 : i32
    %c0_i32_1 = arith.constant 0 : i32
    return %c0_i32, %c0_i32_0 : i32, i32
  }
  func.func @transform_4(%arg0: i32, %arg1: memref<8xi32, #tpu.memory_space<smem>>) -> (i32, i32) {
    %c0_i32 = arith.constant 0 : i32
    %c0_i32_0 = arith.constant 0 : i32
    %c0_i32_1 = arith.constant 0 : i32
    return %c0_i32, %c0_i32_0 : i32, i32
  }
  func.func @transform_5(%arg0: i32, %arg1: memref<8xi32, #tpu.memory_space<smem>>) -> (i32, i32) {
    %c0_i32 = arith.constant 0 : i32
    %c0_i32_0 = arith.constant 0 : i32
    %c0_i32_1 = arith.constant 0 : i32
    return %c0_i32, %c0_i32_0 : i32, i32
  }
  func.func @transform_6(%arg0: i32, %arg1: memref<8xi32, #tpu.memory_space<smem>>) -> (i32, i32) {
    %c0_i32 = arith.constant 0 : i32
    %c0_i32_0 = arith.constant 0 : i32
    %c0_i32_1 = arith.constant 0 : i32
    return %c0_i32, %c0_i32_0 : i32, i32
  }
  func.func @transform_7(%arg0: i32, %arg1: memref<8xi32, #tpu.memory_space<smem>>) -> (i32, i32) {
    %c0_i32 = arith.constant 0 : i32
    %c0_i32_0 = arith.constant 0 : i32
    %c0_i32_1 = arith.constant 0 : i32
    return %c0_i32, %c0_i32_0 : i32, i32
  }
}

</mosaic_0001>

<llo_original>
// kernel: decoder_rnn_decode.1
$region0: #{decoder_rnn_decode.1}
  #allocation0 [shape = 'u32[]', space=smem, size = 0x4, offset = 0x4, fixed_abs, tag = 'smem constant byte address 0x4 - core index']
  #allocation1 [shape = 'u32[72,128]{1,0:T(1,128)}', space=vmem, size = 0x9000, scoped, tag = 'internal scratch']
  #allocation2 [shape = 'f32[8,32]{1,0:T(8,128)}', space=vmem, size = 0x1000, scoped, tag = 'scratch operand']
  #allocation3 [shape = 's32[1]{0}', space=sflag, size = 0x4, scoped, tag = 'scoped memory for decoder_rnn_decode.1']
  #allocation4 [shape = 'u8[512]{0}', space=smem, size = 0x200, scoped, tag = 'prefetched SMEM operand 0']
  %s0 = inlined_call_operand.hbm [shape: s32[8], index: 0, kind: input, shape index: {}]
  %s1 = inlined_call_operand.vmem [shape: f32[1,32], index: 1, kind: input, shape index: {}]
  %s2 = inlined_call_operand.vmem [shape: f32[64,32], index: 2, kind: input, shape index: {}]
  %s3 = inlined_call_operand.vmem [shape: f32[32,128], index: 3, kind: input, shape index: {}]
  %s4 = inlined_call_operand.vmem [shape: f32[32,128], index: 4, kind: input, shape index: {}]
  %s5 = inlined_call_operand.hbm [shape: f32[1,128], index: 5, kind: input, shape index: {}]
  %s6 = inlined_call_operand.vmem [shape: f32[32,128], index: 6, kind: input, shape index: {}]
  %s7 = inlined_call_operand.vmem [shape: f32[1,128], index: 7, kind: input, shape index: {}]
  %s8 = inlined_call_operand.vmem [shape: f32[8,128], index: 8, kind: output, shape index: {}]
  %s9 = sld [smem:[#allocation0]]
  $region42: #{decoder_rnn_decode.1} parent=0
    _
  %s11 = ssub.s32 1, %s9
  %s12 = scalar_select 0, %s11, %s9
  %s14 = sshll.u32 %s0, 4
  %s15 = int_to_ptr.hbm [resolvable:$true] %s14
  %17 = dma.hbm_to_smem %s15, 16, [#allocation4], [#allocation3]
  %19 = dma.done [#allocation3], 16
  %20 = sfence
  $region1: #{decoder_rnn_decode.1} parent=0
    #allocation5 [shape = 'u8[512]{0}', space=vmem, size = 0x400, scoped, tag = 'input window, operand 5, single buffered']
    #allocation6 [shape = 's32[1]{0}', space=sflag, size = 0x4, scoped, tag = 'scoped memory for decoder_rnn_decode.1']
    %21 = vsyncpa [#allocation6], 0
    // Predicated region
    $region2: #{decoder_rnn_decode.1} parent=1 // pred_check
      _
    $region3: #{decoder_rnn_decode.1} parent=1 // pred_check_branch
      %23 = sbr.rel (0) target = $region5
    $region4: #{decoder_rnn_decode.1} parent=1 // pred_region
      _
    $region5: #{decoder_rnn_decode.1} parent=1 // pred_fallthru
      _
    // Predicated region
    $region6: #{decoder_rnn_decode.1} parent=1 // pred_check
      _
    $region7: #{decoder_rnn_decode.1} parent=1 // pred_check_branch
      %25 = sbr.rel (0) target = $region9
    $region8: #{decoder_rnn_decode.1} parent=1 // pred_region
      _
    $region9: #{decoder_rnn_decode.1} parent=1 // pred_fallthru
      _
    // Predicated region
    $region10: #{decoder_rnn_decode.1} parent=1 // pred_check
      _
    $region11: #{decoder_rnn_decode.1} parent=1 // pred_check_branch
      %27 = sbr.rel (0) target = $region13
    $region12: #{decoder_rnn_decode.1} parent=1 // pred_region
      _
    $region13: #{decoder_rnn_decode.1} parent=1 // pred_fallthru
      _
    // Predicated region
    $region14: #{decoder_rnn_decode.1} parent=1 // pred_check
      _
    $region15: #{decoder_rnn_decode.1} parent=1 // pred_check_branch
      %29 = sbr.rel (0) target = $region17
    $region16: #{decoder_rnn_decode.1} parent=1 // pred_region
      _
    $region17: #{decoder_rnn_decode.1} parent=1 // pred_fallthru
      _
    // Predicated region
    $region18: #{decoder_rnn_decode.1} parent=1 // pred_check
      _
    $region19: #{decoder_rnn_decode.1} parent=1 // pred_check_branch
      %31 = sbr.rel (0) target = $region21
    $region20: #{decoder_rnn_decode.1} parent=1 // pred_region
      %33 = vsyncadd [#allocation6], 0
      %s35 = sshll.u32 %s5, 4
      %s36 = int_to_ptr.hbm [resolvable:$true] %s35
      %s37 = sshll.u32 [#allocation5], 4
      %s38 = int_to_ptr.vmem [resolvable:$true] %s37
      %40 = dma.hbm_to_vmem [thread:$0]  %s36, 16, %s38, [#allocation6]
    $region21: #{decoder_rnn_decode.1} parent=1 // pred_fallthru
      _
    // Predicated region
    $region22: #{decoder_rnn_decode.1} parent=1 // pred_check
      _
    $region23: #{decoder_rnn_decode.1} parent=1 // pred_check_branch
      %42 = sbr.rel (0) target = $region25
    $region24: #{decoder_rnn_decode.1} parent=1 // pred_region
      _
    $region25: #{decoder_rnn_decode.1} parent=1 // pred_fallthru
      _
    // Predicated region
    $region26: #{decoder_rnn_decode.1} parent=1 // pred_check
      _
    $region27: #{decoder_rnn_decode.1} parent=1 // pred_check_branch
      %44 = sbr.rel (0) target = $region29
    $region28: #{decoder_rnn_decode.1} parent=1 // pred_region
      _
    $region29: #{decoder_rnn_decode.1} parent=1 // pred_fallthru
      _
    // Predicated region
    $region30: #{decoder_rnn_decode.1} parent=1 // pred_check
      _
    $region31: #{decoder_rnn_decode.1} parent=1 // pred_check_branch
      %46 = sbr.rel (0) target = $region33
    $region32: #{decoder_rnn_decode.1} parent=1 // pred_region
      %48 = dma.done [#allocation6], 16
    $region33: #{decoder_rnn_decode.1} parent=1 // pred_fallthru
      _
    %v49 = vld [vmem:[%s1] sm:$0x1]
    %v50 = vld [vmem:[%s4] sm:$0xff]
    %v51 = vld [vmem:[%s4 + $0x8] sm:$0xff]
    %v52 = vld [vmem:[%s4 + $0x10] sm:$0xff]
    %v53 = vld [vmem:[%s4 + $0x18] sm:$0xff]
    %v54 = vld [vmem:[#allocation5] sm:$0x1]
    %vm55 = vcmask 261120
    %v57 = vsel %vm55, %v49, 0
    %59 = vmatpush.msra.mxu0 0.0
    %60 = vmatpush.msra.mxu0 0.0
    %61 = vmatpush.msra.mxu0 0.0
    %62 = vmatpush.msra.mxu0 0.0
    %63 = vmatpush.msra.mxu0 0.0
    %64 = vmatpush.msra.mxu0 0.0
    %65 = vmatpush.msra.mxu0 0.0
    %66 = vmatpush.msra.mxu0 0.0
    %67 = vmatpush.msra.mxu0 0.0
    %68 = vmatpush.msra.mxu0 0.0
    %69 = vmatpush.msra.mxu0 0.0
    %70 = vmatpush.msra.mxu0 0.0
    %71 = vmatpush.msra.mxu0 %v53
    %72 = vmatpush.msra.mxu0 %v52
    %73 = vmatpush.msra.mxu0 %v51
    %74 = vmatpush.msra.mxu0 %v50
    %75 = vmatmul.f32.gmra.mxu0 %v57
    %v76 = vpop.f32.mrf.mxu0
    %v77 = vadd.f32 %v54, %v76
    %78 = vdwg.mxu0
    %s79 = sld [smem:[#allocation4]]
    %s80 = scalar_lea.vmem %s2, %s79
    %v81 = vld [vmem:[%s80] sm:$0x1]
    %vm82 = vcmask 253952
    %83 = vst.msk [vmem:[#allocation2] sm:$0x1] %vm82, %v81
    %s84 = sld [smem:[#allocation4 + $0x1]]
    %s85 = scalar_lea.vmem %s2, %s84
    %v86 = vld [vmem:[%s85] sm:$0x1]
    %87 = vst.msk [vmem:[#allocation2 + $0x1] sm:$0x1] %vm82, %v86
    %s88 = sld [smem:[#allocation4 + $0x2]]
    %s89 = scalar_lea.vmem %s2, %s88
    %v90 = vld [vmem:[%s89] sm:$0x1]
    %91 = vst.msk [vmem:[#allocation2 + $0x2] sm:$0x1] %vm82, %v90
    %s92 = sld [smem:[#allocation4 + $0x3]]
    %s93 = scalar_lea.vmem %s2, %s92
    %v94 = vld [vmem:[%s93] sm:$0x1]
    %95 = vst.msk [vmem:[#allocation2 + $0x3] sm:$0x1] %vm82, %v94
    %s96 = sld [smem:[#allocation4 + $0x4]]
    %s97 = scalar_lea.vmem %s2, %s96
    %v98 = vld [vmem:[%s97] sm:$0x1]
    %99 = vst.msk [vmem:[#allocation2 + $0x4] sm:$0x1] %vm82, %v98
    %s100 = sld [smem:[#allocation4 + $0x5]]
    %s101 = scalar_lea.vmem %s2, %s100
    %v102 = vld [vmem:[%s101] sm:$0x1]
    %103 = vst.msk [vmem:[#allocation2 + $0x5] sm:$0x1] %vm82, %v102
    %s104 = sld [smem:[#allocation4 + $0x6]]
    %s105 = scalar_lea.vmem %s2, %s104
    %v106 = vld [vmem:[%s105] sm:$0x1]
    %107 = vst.msk [vmem:[#allocation2 + $0x6] sm:$0x1] %vm82, %v106
    %s108 = sld [smem:[#allocation4 + $0x7]]
    %s109 = scalar_lea.vmem %s2, %s108
    %v110 = vld [vmem:[%s109] sm:$0x1]
    %111 = vst.msk [vmem:[#allocation2 + $0x7] sm:$0x1] %vm82, %v110
    %v112 = vld [vmem:[#allocation2] sm:$0xff]
    %v113 = vld [vmem:[%s3] sm:$0xff]
    %v114 = vld [vmem:[%s3 + $0x8] sm:$0xff]
    %v115 = vld [vmem:[%s3 + $0x10] sm:$0xff]
    %v116 = vld [vmem:[%s3 + $0x18] sm:$0xff]
    %v117 = vperm.slane %v77, 0
    %v119 = vsel %vm55, %v112, 0
    %121 = vmatpush.msra.mxu0 0.0
    %122 = vmatpush.msra.mxu0 0.0
    %123 = vmatpush.msra.mxu0 0.0
    %124 = vmatpush.msra.mxu0 0.0
    %125 = vmatpush.msra.mxu0 0.0
    %126 = vmatpush.msra.mxu0 0.0
    %127 = vmatpush.msra.mxu0 0.0
    %128 = vmatpush.msra.mxu0 0.0
    %129 = vmatpush.msra.mxu0 0.0
    %130 = vmatpush.msra.mxu0 0.0
    %131 = vmatpush.msra.mxu0 0.0
    %132 = vmatpush.msra.mxu0 0.0
    %133 = vmatpush.msra.mxu0 %v116
    %134 = vmatpush.msra.mxu0 %v115
    %135 = vmatpush.msra.mxu0 %v114
    %136 = vmatpush.msra.mxu0 %v113
    %137 = vmatmul.f32.gmra.mxu0 %v119
    %v138 = vpop.f32.mrf.mxu0
    %v139 = vadd.f32 %v117, %v138
    %140 = vdwg.mxu0
    %v141 = vxor.u32 %v139, 2147483648
    %v142 = vmul.f32 %v141, 1.442695
    %v143 = vpow.pop %v142
    %v144 = vadd.f32 %v143, 1.0
    %v145 = vrcp.pop %v144
    %v146 = vmul.f32 %v144, %v145
    %v147 = vsub.f32 1.0, %v146
    %v148 = vmul.f32 %v145, %v147
    %v149 = vadd.f32 %v145, %v148
    %vm150 = vweird.f32 %v144
    %vm151 = vweird.f32 %v145
    %vm152 = vmor %vm150, %vm151
    %v153 = vsel %vm152, %v145, %v149
    %v154 = vand.u32 2147483647, %v144
    %vm155 = vcmp.eq.f32.partialorder %v154, 8.507059e+37
    %v156 = vand.u32 %v144, 2147483648
    %v157 = vor.u32 1.1754944e-38, %v156
    %v158 = vsel %vm155, %v157, %v153
    %v159 = vmul.f32 1.0, %v158
    %161 = vrot.lane.b32.xlu0 %v139, 32
    %v162 = vpop.permute.xlu0 %161
    %v164 = vmul.f32 %v159, %v162
    %166 = vrot.lane.b32.xlu0 %v164, 64
    %v167 = vpop.permute.xlu0 %166
    %v169 = vadd.f32 %v139, %v167
    %v170 = vtanh.pop %v169
    %v171 = vsub.f32 1.0, %v159
    %173 = vrot.lane.b32.xlu0 %v170, 96
    %v174 = vpop.permute.xlu0 %173
    %v176 = vmul.f32 %v171, %v174
    %v177 = vperm.slane %v49, 0
    %178 = vrot.lane.b32.xlu0 %v177, 32
    %v179 = vpop.permute.xlu0 %178
    %v181 = vmul.f32 %v159, %v179
    %v182 = vadd.f32 %v176, %v181
    %v183 = vld [vmem:[%s6] sm:$0xff]
    %v184 = vld [vmem:[%s6 + $0x8] sm:$0xff]
    %v185 = vld [vmem:[%s6 + $0x10] sm:$0xff]
    %v186 = vld [vmem:[%s6 + $0x18] sm:$0xff]
    %v187 = vld [vmem:[%s7] sm:$0x1]
    %v189 = vperm.slane %v187, 0
    %192 = vrot.lane.b32.xlu0 %v182, 96
    %v193 = vpop.permute.xlu0 %192
    %v194 = vsel %vm55, %v193, 0
    %196 = vmatpush.msra.mxu0 0.0
    %197 = vmatpush.msra.mxu0 0.0
    %198 = vmatpush.msra.mxu0 0.0
    %199 = vmatpush.msra.mxu0 0.0
    %200 = vmatpush.msra.mxu0 0.0
    %201 = vmatpush.msra.mxu0 0.0
    %202 = vmatpush.msra.mxu0 0.0
    %203 = vmatpush.msra.mxu0 0.0
    %204 = vmatpush.msra.mxu0 0.0
    %205 = vmatpush.msra.mxu0 0.0
    %206 = vmatpush.msra.mxu0 0.0
    %207 = vmatpush.msra.mxu0 0.0
    %208 = vmatpush.msra.mxu0 %v186
    %209 = vmatpush.msra.mxu0 %v185
    %210 = vmatpush.msra.mxu0 %v184
    %211 = vmatpush.msra.mxu0 %v183
    %212 = vmatmul.f32.gmra.mxu0 %v194
    %v213 = vpop.f32.mrf.mxu0
    %v214 = vadd.f32 %v189, %v213
    %215 = vdwg.mxu0
    %216 = vst [vmem:[%s8] sm:$0xff] %v214
    // Predicated region
    $region34: #{decoder_rnn_decode.1} parent=1 // pred_check
      _
    $region35: #{decoder_rnn_decode.1} parent=1 // pred_check_branch
      %218 = sbr.rel (0) target = $region37
    $region36: #{decoder_rnn_decode.1} parent=1 // pred_region
      _
    $region37: #{decoder_rnn_decode.1} parent=1 // pred_fallthru
      _
    // Predicated region
    $region38: #{decoder_rnn_decode.1} parent=1 // pred_check
      _
    $region39: #{decoder_rnn_decode.1} parent=1 // pred_check_branch
      %220 = sbr.rel (0) target = $region41
    $region40: #{decoder_rnn_decode.1} parent=1 // pred_region
      _
    $region41: #{decoder_rnn_decode.1} parent=1 // pred_fallthru
      _
    %221 = vsyncpa [#allocation6], 1

</llo_original>
